<compile_context>
chip_gen: v5e
topology: v5e:2x2
jax: 0.10.0
libtpu: 0.0.40
codegen_flags: <defaults>
</compile_context>

<pallas_src>
import functools

import jax
import jax.numpy as jnp
from jax.experimental import pallas as pl
from jax.experimental.pallas import tpu as pltpu

LN_EPS = 1e-5
_SUBLANE = 8


def _round_up(v, m):
    return ((v + m - 1) // m) * m


def _vmem_capacity_bytes():
    """Per-core VMEM capacity (v5e/v6e: 128 MiB, v7x: 64 MiB)."""
    try:
        info = pltpu.get_tpu_info()
        cap = getattr(info, "vmem_capacity_bytes", None)
        if cap:
            return int(cap)
    except Exception:
        pass
    return 64 << 20  # conservative default (v7x-sized)


def fold_prenorm_linear_params(ln_gamma, ln_beta, w, b, *, matmul_dtype=None):
    """Fold the LayerNorm affine into the Linear layer (do ONCE at prep time).

    (xn * gamma + beta) @ W + b == xn @ (diag(gamma) @ W) + (beta @ W + b)

    w is (in, out) so the kernel applies y = xn @ w (== torch x @ W.T).
    matmul_dtype: optionally bf16 to run the MXU at bf16 rate (f32 accumulate
    is kept in-kernel); default keeps w.dtype.
    """
    w32 = w.astype(jnp.float32)
    w_f = ln_gamma.astype(jnp.float32)[:, None] * w32
    b_f = ln_beta.astype(jnp.float32) @ w32 + b.astype(jnp.float32)
    dtype = matmul_dtype if matmul_dtype is not None else w.dtype
    return w_f.astype(dtype), b_f.reshape(1, -1).astype(dtype)


def _prenorm_linear_kernel(x_ref, w_ref, b_ref, o_ref):
    """Fused LayerNorm (affine pre-folded into W'/b') + Linear for one row tile.

    x_ref : (tm, D)   rows of x
    w_ref : (D, D)    W' = diag(gamma) @ W
    b_ref : (1, D)    b' = beta @ W + b
    o_ref : (tm, D)
    """
    x = x_ref[...].astype(jnp.float32)
    inv_d = jnp.float32(1.0 / x.shape[-1])
    # One elementwise pass + two XLU reductions.
    s1 = jnp.sum(x, axis=-1, keepdims=True)
    s2 = jnp.sum(x * x, axis=-1, keepdims=True)
    mean = s1 * inv_d
    # Clamp: E[x^2] - mean^2 can go slightly negative from f32 cancellation.
    var = jnp.maximum(s2 * inv_d - mean * mean, 0.0)
    xn = (x - mean) * jax.lax.rsqrt(var + LN_EPS)
    xn = xn.astype(w_ref.dtype)
    out = jnp.dot(xn, w_ref[...], preferred_element_type=jnp.float32)
    out = out + b_ref[...].astype(jnp.float32)
    o_ref[...] = out.astype(o_ref.dtype)


def _choose_row_tile(M, D, x_itemsize, w_itemsize, block_rows, vmem_cap):
    """Balanced row-tile size that fits the generation's VMEM budget."""
    budget = int(vmem_cap * 0.6)                    # headroom for compiler scratch
    weight_bytes = (D * D + D) * w_itemsize         # single-buffered weight + bias
    per_row = (2 * D * x_itemsize                   # double-buffered input tile
               + 2 * D * x_itemsize                 # double-buffered output tile
               + 3 * D * 4)                         # in-kernel f32 temporaries
    tm_cap = max((budget - weight_bytes) // per_row, _SUBLANE)
    # Balanced tiling (minimize wasted rows in the ragged last block) with a
    # few grid steps so the DMA pipeline has depth and the "parallel" axis can
    # split across TensorCores on multi-core chips (v7x has 2 per chip).
    target_steps = max(pl.cdiv(M, block_rows), min(4, pl.cdiv(M, _SUBLANE)))
    tm = _round_up(pl.cdiv(M, target_steps), _SUBLANE)
    tm = max(min(tm, tm_cap), _SUBLANE)
    return _round_up(tm, _SUBLANE)


@functools.partial(jax.jit, static_argnames=("block_rows",))
def prenorm_linear(x, w_folded, b_folded, *, block_rows=512):
    """y = LayerNorm(x) @ W' + b' for x of shape (..., D).

    w_folded: (D, D) from fold_prenorm_linear_params; b_folded: (1, D).
    """
    *lead, D = x.shape
    M = 1
    for s in lead:
        M *= s
    x2 = x.reshape(M, D)  # contiguous metadata reshape — no HBM copy / pad

    x_itemsize = jnp.dtype(x.dtype).itemsize
    w_itemsize = jnp.dtype(w_folded.dtype).itemsize
    vmem_cap = _vmem_capacity_bytes()
    tm = _choose_row_tile(M, D, x_itemsize, w_itemsize, block_rows, vmem_cap)
    grid = (pl.cdiv(M, tm),)  # ragged last block OK: computation is row-local

    # Scoped-VMEM limit from the actual footprint (weight budgeted x2 for
    # safety) with headroom, clamped under this generation's capacity.
    footprint = (4 * tm * D * x_itemsize
                 + 2 * (D * D + D) * w_itemsize
                 + 3 * tm * D * 4)
    vmem_limit = max(4 << 20,
                     min(int(footprint * 1.5) + (2 << 20), int(vmem_cap * 3 // 4)))

    cost = pl.CostEstimate(
        flops=2 * M * D * D,
        transcendentals=M,  # one rsqrt per row
        bytes_accessed=2 * M * D * x_itemsize + (D * D + D) * w_itemsize,
    )

    out2 = pl.pallas_call(
        _prenorm_linear_kernel,
        out_shape=jax.ShapeDtypeStruct((M, D), x.dtype),
        grid_spec=pltpu.PrefetchScalarGridSpec(
            num_scalar_prefetch=0,
            grid=grid,
            in_specs=[
                pl.BlockSpec((tm, D), lambda i: (i, 0)),  # x row tile
                # Grid-invariant weight / bias: single-buffered (double-
                # buffering a constant block only wastes VMEM, esp. on v7x).
                pl.BlockSpec((D, D), lambda i: (0, 0),
                             pipeline_mode=pl.Buffered(1)),
                pl.BlockSpec((1, D), lambda i: (0, 0),
                             pipeline_mode=pl.Buffered(1)),
            ],
            out_specs=pl.BlockSpec((tm, D), lambda i: (i, 0)),
        ),
        compiler_params=pltpu.CompilerParams(
            dimension_semantics=("parallel",),
            vmem_limit_bytes=vmem_limit,
        ),
        cost_estimate=cost,
    )(x2, w_folded, b_folded)

    return out2.reshape(*lead, D)


def _reference(x, ln_gamma, ln_beta, w, b):
    xf = x.astype(jnp.float32)
    mean = jnp.mean(xf, axis=-1, keepdims=True)
    var = jnp.mean((xf - mean) ** 2, axis=-1, keepdims=True)
    xn = (xf - mean) / jnp.sqrt(var + LN_EPS)
    y = xn * ln_gamma + ln_beta
    return (y @ w + b).astype(x.dtype)


if __name__ == "__main__":
    # TODO(synk): PreNorm.fn is an arbitrary user-supplied module; this kernel
    # instantiates the canonical fn = nn.Linear(dim, dim) case.
    B, N, D = 2, 8, 32

    key = jax.random.PRNGKey(0)
    kx, kw, kb, kg, kbt = jax.random.split(key, 5)

    x = jax.random.normal(kx, (B, N, D), dtype=jnp.float32)

    # Non-trivial LN affine so the fold is actually exercised.
    ln_gamma = 1.0 + 0.1 * jax.random.normal(kg, (D,), jnp.float32)
    ln_beta = 0.1 * jax.random.normal(kbt, (D,), jnp.float32)
    bound = 1.0 / (D ** 0.5)
    # Stored as (in, out) so the kernel applies y @ w (== torch x @ W.T).
    w = jax.random.uniform(kw, (D, D), jnp.float32, -bound, bound)
    b = jax.random.uniform(kb, (D,), jnp.float32, -bound, bound)

    # Fold LN affine into the linear layer ONCE, at parameter-prep time.
    w_f, b_f = fold_prenorm_linear_params(ln_gamma, ln_beta, w, b)

    out = prenorm_linear(x, w_f, b_f)
    out = jax.block_until_ready(out)

    ref = _reference(x, ln_gamma, ln_beta, w, b)
    assert out.shape == (B, N, D)
    assert jnp.allclose(out, ref, atol=1e-4, rtol=1e-4)

    print("KERNEL_OK")
</pallas_src>

<mosaic_0001>
module attributes {stable_mosaic.version = 11 : i64} {
  func.func @_prenorm_linear_kernel(%arg0: i32, %arg1: memref<8x32xf32, #tpu.memory_space<vmem>>, %arg2: memref<32x32xf32, #tpu.memory_space<vmem>>, %arg3: memref<1x32xf32, #tpu.memory_space<vmem>>, %arg4: memref<8x32xf32, #tpu.memory_space<vmem>>) attributes {dimension_semantics = [#tpu.dimension_semantics<parallel>], iteration_bounds = array<i64: 2>, scalar_prefetch = 0 : i64, scratch_operands = 0 : i64, tpu.core_type = #tpu.core_type<tc>, window_params = [{transform_indices = @transform_0, window_bounds = array<i64: 8, 32>}, {pipeline_mode = #tpu.pipeline_mode<synchronous>, transform_indices = @transform_1, window_bounds = array<i64: 32, 32>}, {pipeline_mode = #tpu.pipeline_mode<synchronous>, transform_indices = @transform_2, window_bounds = array<i64: 1, 32>}, {transform_indices = @transform_3, window_bounds = array<i64: 8, 32>}]} {
    %c0 = arith.constant 0 : index
    %c0_0 = arith.constant 0 : index
    %0 = vector.load %arg1[%c0, %c0_0] : memref<8x32xf32, #tpu.memory_space<vmem>>, vector<8x32xf32>
    %cst = arith.constant dense<0.000000e+00> : vector<8xf32>
    %1 = vector.multi_reduction <add>, %0, %cst [1] : vector<8x32xf32> to vector<8xf32>
    %2 = vector.shape_cast %1 : vector<8xf32> to vector<8x1xf32>
    %3 = arith.mulf %0, %0 : vector<8x32xf32>
    %cst_1 = arith.constant dense<0.000000e+00> : vector<8xf32>
    %4 = vector.multi_reduction <add>, %3, %cst_1 [1] : vector<8x32xf32> to vector<8xf32>
    %5 = vector.shape_cast %4 : vector<8xf32> to vector<8x1xf32>
    %cst_2 = arith.constant 3.125000e-02 : f32
    %6 = vector.broadcast %cst_2 : f32 to vector<8x1xf32>
    %7 = arith.mulf %2, %6 : vector<8x1xf32>
    %cst_3 = arith.constant 3.125000e-02 : f32
    %8 = vector.broadcast %cst_3 : f32 to vector<8x1xf32>
    %9 = arith.mulf %5, %8 : vector<8x1xf32>
    %10 = arith.mulf %7, %7 : vector<8x1xf32>
    %11 = arith.subf %9, %10 : vector<8x1xf32>
    %cst_4 = arith.constant 0.000000e+00 : f32
    %12 = vector.broadcast %cst_4 : f32 to vector<8x1xf32>
    %13 = arith.maximumf %11, %12 : vector<8x1xf32>
    %14 = vector.broadcast %7 : vector<8x1xf32> to vector<8x32xf32>
    %15 = arith.subf %0, %14 : vector<8x32xf32>
    %cst_5 = arith.constant 9.99999974E-6 : f32
    %16 = vector.broadcast %cst_5 : f32 to vector<8x1xf32>
    %17 = arith.addf %13, %16 : vector<8x1xf32>
    %18 = math.rsqrt %17 : vector<8x1xf32>
    %19 = vector.broadcast %18 : vector<8x1xf32> to vector<8x32xf32>
    %20 = arith.mulf %15, %19 : vector<8x32xf32>
    %c0_6 = arith.constant 0 : index
    %c0_7 = arith.constant 0 : index
    %21 = vector.load %arg2[%c0_6, %c0_7] : memref<32x32xf32, #tpu.memory_space<vmem>>, vector<32x32xf32>
    %cst_8 = arith.constant dense<0.000000e+00> : vector<8x32xf32>
    %22 = tpu.matmul %20, %21, %cst_8 {dimension_numbers = #tpu.dot_dimension_numbers<[1], [0], [0], [1], [0, 0, 1, 1], [], []>} : vector<8x32xf32>, vector<32x32xf32>, vector<8x32xf32> -> vector<8x32xf32>
    %c0_9 = arith.constant 0 : index
    %c0_10 = arith.constant 0 : index
    %23 = vector.load %arg3[%c0_9, %c0_10] : memref<1x32xf32, #tpu.memory_space<vmem>>, vector<1x32xf32>
    %24 = vector.broadcast %23 : vector<1x32xf32> to vector<8x32xf32>
    %25 = arith.addf %22, %24 : vector<8x32xf32>
    %c0_11 = arith.constant 0 : index
    %c0_12 = arith.constant 0 : index
    %26 = vector.load %arg4[%c0_11, %c0_12] : memref<8x32xf32, #tpu.memory_space<vmem>>, vector<8x32xf32>
    tpu.vector_store %arg4[%c0_11, %c0_12], %25 {strides = array<i32>} : memref<8x32xf32, #tpu.memory_space<vmem>>, vector<8x32xf32>,
    return
  }
  func.func @transform_0(%arg0: i32) -> (i32, i32) {
    %c0_i32 = arith.constant 0 : i32
    %c0_i32_0 = arith.constant 0 : i32
    return %arg0, %c0_i32 : i32, i32
  }
  func.func @transform_1(%arg0: i32) -> (i32, i32) {
    %c0_i32 = arith.constant 0 : i32
    %c0_i32_0 = arith.constant 0 : i32
    %c0_i32_1 = arith.constant 0 : i32
    return %c0_i32, %c0_i32_0 : i32, i32
  }
  func.func @transform_2(%arg0: i32) -> (i32, i32) {
    %c0_i32 = arith.constant 0 : i32
    %c0_i32_0 = arith.constant 0 : i32
    %c0_i32_1 = arith.constant 0 : i32
    return %c0_i32, %c0_i32_0 : i32, i32
  }
  func.func @transform_3(%arg0: i32) -> (i32, i32) {
    %c0_i32 = arith.constant 0 : i32
    %c0_i32_0 = arith.constant 0 : i32
    return %arg0, %c0_i32 : i32, i32
  }
}

</mosaic_0001>

<llo_original>
// kernel: prenorm_linear.1
$region0: #{prenorm_linear.1}
  #allocation0 [shape = 'u32[]', space=smem, size = 0x4, offset = 0x4, fixed_abs, tag = 'smem constant byte address 0x4 - core index']
  #allocation1 [shape = 'u32[72,128]{1,0:T(1,128)}', space=vmem, size = 0x9000, scoped, tag = 'internal scratch']
  %s0 = inlined_call_operand.hbm [shape: f32[16,32], index: 0, kind: input, shape index: {}]
  %s1 = inlined_call_operand.hbm [shape: f32[32,32], index: 1, kind: input, shape index: {}]
  %s2 = inlined_call_operand.vmem [shape: f32[1,32], index: 2, kind: input, shape index: {}]
  %s3 = inlined_call_operand.hbm [shape: f32[16,32], index: 3, kind: output, shape index: {}]
  %s4 = sld [smem:[#allocation0]]
  $region53: #{prenorm_linear.1} parent=0
    _
  %s6 = ssub.s32 1, %s4
  %s7 = scalar_select 0, %s6, %s4
  $region1: #{prenorm_linear.1} parent=0
    #allocation2 [shape = 'u8[8192]{0}', space=vmem, size = 0x2000, scoped, tag = 'input window, operand 0']
    #allocation3 [shape = 's32[2]{0}', space=sflag, size = 0x8, scoped, tag = 'scoped memory for prenorm_linear.1']
    #allocation4 [shape = 's32[2]{0}', space=sflag, size = 0x8, scoped, tag = 'scoped memory for prenorm_linear.1']
    #allocation5 [shape = 'u8[16384]{0}', space=vmem, size = 0x4000, scoped, tag = 'input window, operand 1, single buffered']
    #allocation6 [shape = 's32[1]{0}', space=sflag, size = 0x4, scoped, tag = 'scoped memory for prenorm_linear.1']
    #allocation7 [shape = 'u8[8192]{0}', space=vmem, size = 0x2000, scoped, tag = 'output window, operand 0']
    %8 = vsyncpa [#allocation3], 0
    %s9 = scalar_lea.sflag [#allocation3], 1
    %10 = vsyncpa %s9, 0
    %11 = vsyncpa [#allocation6], 0
    %12 = vsyncpa [#allocation4], 0
    %s13 = scalar_lea.sflag [#allocation4], 1
    %14 = vsyncpa %s13, 0
    loop: start=0, step=1, limit=4
    $region2: #{prenorm_linear.1} parent=1 // loop_pre_header
      _
    $region3: #{prenorm_linear.1} parent=1 // loop_header
      %s16 = sphi 0, %s20
      %p17 = scmp.ge.s32.totalorder %s16, 4
      %s26 = sphi 0, %s28
      %s29 = sphi 0, %s26
      %s30 = sphi 0, %s29
      %s46 = sphi 0, %s30
      %s50 = sphi 0, %s50
      %s52 = sphi 0, %s50
      %s53 = sphi 0, %s52
      %s67 = sphi 0, %s53
      %s71 = sphi 0, %s71
      %s73 = sphi 0, %s71
      %s74 = sphi 0, %s73
      %s88 = sphi 0, %s74
      %s94 = sphi 0, %s96
      %s97 = sphi 0, %s94
      %s98 = sphi 0, %s97
      %s114 = sphi 0, %s98
    $region4: #{prenorm_linear.1} parent=1 // loop_header_branch
      %19 = sbr.rel (%p17) target = $region8
    $region5: #{prenorm_linear.1} parent=1 // loop_body
      %s21 = ssub.s32 %s16, 1
      %s22 = ssub.s32 %s16, 2
      %s23 = sadd.s32 %s16, 1
      %s24 = ssub.s32 %s16, %s23
      %p25 = scmp.eq.s32.totalorder %s24, 0
      %s27 = sadd.s32 %s26, 1
      %s28 = scalar_select %p25, %s26, %s27
      %p31 = pneg %p25
      %p32 = scmp.eq.s32.totalorder %s16, 1
      %p33 = por %p31, %p32
      %p34 = scmp.ne.s32.totalorder %s26, %s29
      %p35 = scmp.eq.s32.totalorder %s16, 0
      %p36 = por %p34, %p35
      %p37 = scmp.ne.s32.totalorder %s26, %s29
      %p38 = scmp.eq.s32.totalorder %s21, 1
      %p39 = por %p37, %p38
      %p40 = scmp.ne.s32.totalorder %s29, %s30
      %p41 = scmp.eq.s32.totalorder %s21, 0
      %p42 = por %p40, %p41
      %p43 = scmp.ne.s32.totalorder %s29, %s30
      %p44 = scmp.eq.s32.totalorder %s22, 1
      %p45 = por %p43, %p44
      %p47 = scmp.ne.s32.totalorder %s30, %s46
      %p48 = scmp.eq.s32.totalorder %s22, 0
      %p49 = por %p47, %p48
      %s51 = sadd.s32 %s50, 1
      %p54 = scmp.eq.s32.totalorder %s16, 1
      %p55 = scmp.ne.s32.totalorder %s50, %s52
      %p56 = scmp.eq.s32.totalorder %s16, 0
      %p57 = por %p55, %p56
      %p58 = scmp.ne.s32.totalorder %s50, %s52
      %p59 = scmp.eq.s32.totalorder %s21, 1
      %p60 = por %p58, %p59
      %p61 = scmp.ne.s32.totalorder %s52, %s53
      %p62 = scmp.eq.s32.totalorder %s21, 0
      %p63 = por %p61, %p62
      %p64 = scmp.ne.s32.totalorder %s52, %s53
      %p65 = scmp.eq.s32.totalorder %s22, 1
      %p66 = por %p64, %p65
      %p68 = scmp.ne.s32.totalorder %s53, %s67
      %p69 = scmp.eq.s32.totalorder %s22, 0
      %p70 = por %p68, %p69
      %s72 = sadd.s32 %s71, 1
      %p75 = scmp.eq.s32.totalorder %s16, 1
      %p76 = scmp.ne.s32.totalorder %s71, %s73
      %p77 = scmp.eq.s32.totalorder %s16, 0
      %p78 = por %p76, %p77
      %p79 = scmp.ne.s32.totalorder %s71, %s73
      %p80 = scmp.eq.s32.totalorder %s21, 1
      %p81 = por %p79, %p80
      %p82 = scmp.ne.s32.totalorder %s73, %s74
      %p83 = scmp.eq.s32.totalorder %s21, 0
      %p84 = por %p82, %p83
      %p85 = scmp.ne.s32.totalorder %s73, %s74
      %p86 = scmp.eq.s32.totalorder %s22, 1
      %p87 = por %p85, %p86
      %p89 = scmp.ne.s32.totalorder %s74, %s88
      %p90 = scmp.eq.s32.totalorder %s22, 0
      %p91 = por %p89, %p90
      %s92 = ssub.s32 %s16, %s23
      %p93 = scmp.eq.s32.totalorder %s92, 0
      %s95 = sadd.s32 %s94, 1
      %s96 = scalar_select %p93, %s94, %s95
      %p99 = pneg %p93
      %p100 = scmp.eq.s32.totalorder %s16, 1
      %p101 = por %p99, %p100
      %p102 = scmp.ne.s32.totalorder %s94, %s97
      %p103 = scmp.eq.s32.totalorder %s16, 0
      %p104 = por %p102, %p103
      %p105 = scmp.ne.s32.totalorder %s94, %s97
      %p106 = scmp.eq.s32.totalorder %s21, 1
      %p107 = por %p105, %p106
      %p108 = scmp.ne.s32.totalorder %s97, %s98
      %p109 = scmp.eq.s32.totalorder %s21, 0
      %p110 = por %p108, %p109
      %p111 = scmp.ne.s32.totalorder %s97, %s98
      %p112 = scmp.eq.s32.totalorder %s22, 1
      %p113 = por %p111, %p112
      %p115 = scmp.ne.s32.totalorder %s98, %s114
      %p116 = scmp.eq.s32.totalorder %s22, 0
      %p117 = por %p115, %p116
      %p118 = scmp.le.s32.totalorder 1, %s16
      %p119 = scmp.lt.s32.totalorder %s16, 3
      %p120 = pnand %p118, %p119
      %p121 = pneg %p120
      // Predicated region
      $region9: #{prenorm_linear.1} parent=5 // pred_check
        _
      $region10: #{prenorm_linear.1} parent=5 // pred_check_branch
        %123 = sbr.rel (%p120) target = $region12
      $region11: #{prenorm_linear.1} parent=5 // pred_region
        %s124 = ssub.s32 %s16, 1
        // Predicated region
        $region13: #{prenorm_linear.1} parent=11 // pred_check
          %p125 = pneg %p63
        $region14: #{prenorm_linear.1} parent=11 // pred_check_branch
          %127 = sbr.rel (%p125) target = $region16
        $region15: #{prenorm_linear.1} parent=11 // pred_region
          %129 = vsyncadd [#allocation6], 0
          %s130 = sshll.u32 %s1, 4
          %s131 = int_to_ptr.hbm [resolvable:$true] %s130
          %s132 = sshll.u32 [#allocation5], 4
          %s133 = int_to_ptr.vmem [resolvable:$true] %s132
          %138 = dma.hbm_to_vmem [thread:$0]  %s131, 512, %s133, [#allocation6], 128, 128, 8
        $region16: #{prenorm_linear.1} parent=11 // pred_fallthru
          _
        // Predicated region
        $region17: #{prenorm_linear.1} parent=11 // pred_check
          %p139 = pneg %p84
        $region18: #{prenorm_linear.1} parent=11 // pred_check_branch
          %141 = sbr.rel (%p139) target = $region20
        $region19: #{prenorm_linear.1} parent=11 // pred_region
          _
        $region20: #{prenorm_linear.1} parent=11 // pred_fallthru
          _
      $region12: #{prenorm_linear.1} parent=5 // pred_fallthru
        _
      %p142 = scmp.lt.s32.totalorder %s16, 2
      // Predicated region
      $region21: #{prenorm_linear.1} parent=5 // pred_check
        %p143 = pneg %p142
      $region22: #{prenorm_linear.1} parent=5 // pred_check_branch
        %145 = sbr.rel (%p143) target = $region24
      $region23: #{prenorm_linear.1} parent=5 // pred_region
        // Predicated region
        $region25: #{prenorm_linear.1} parent=23 // pred_check
          %p146 = pneg %p36
        $region26: #{prenorm_linear.1} parent=23 // pred_check_branch
          %148 = sbr.rel (%p146) target = $region28
        $region27: #{prenorm_linear.1} parent=23 // pred_region
          %s149 = sand.u32 %s26, 1
          %s150 = scalar_lea.sflag [#allocation3], %s149
          %s151 = sand.u32 %s26, 1
          %s152 = smul.addr %s151, 8
          %s153 = scalar_lea.vmem [#allocation2], %s152
          %155 = vsyncadd %s150, 0
          %s156 = smul.addr %s16, 8
          %s157 = scalar_lea.hbm %s0, %s156
          %s159 = sshll.u32 %s157, 4
          %s160 = int_to_ptr.hbm [resolvable:$true] %s159
          %s161 = sshll.u32 %s153, 4
          %s162 = int_to_ptr.vmem [resolvable:$true] %s161
          %164 = dma.hbm_to_vmem [thread:$0]  %s160, 128, %s162, %s150
        $region28: #{prenorm_linear.1} parent=23 // pred_fallthru
          _
      $region24: #{prenorm_linear.1} parent=5 // pred_fallthru
        _
      %p165 = scmp.le.s32.totalorder 1, %s16
      %p166 = scmp.lt.s32.totalorder %s16, 3
      %p167 = pnand %p165, %p166
      %p168 = pneg %p167
      // Predicated region
      $region29: #{prenorm_linear.1} parent=5 // pred_check
        _
      $region30: #{prenorm_linear.1} parent=5 // pred_check_branch
        %170 = sbr.rel (%p167) target = $region32
      $region31: #{prenorm_linear.1} parent=5 // pred_region
        %s171 = ssub.s32 %s16, 1
        %s172 = sand.u32 %s29, 1
        %s173 = scalar_lea.sflag [#allocation3], %s172
        %s174 = sand.u32 %s29, 1
        %s175 = smul.addr %s174, 8
        %s176 = scalar_lea.vmem [#allocation2], %s175
        // Predicated region
        $region33: #{prenorm_linear.1} parent=31 // pred_check
          %p177 = pneg %p42
        $region34: #{prenorm_linear.1} parent=31 // pred_check_branch
          %179 = sbr.rel (%p177) target = $region36
        $region35: #{prenorm_linear.1} parent=31 // pred_region
          %181 = dma.done %s173, 128
        $region36: #{prenorm_linear.1} parent=31 // pred_fallthru
          _
        // Predicated region
        $region37: #{prenorm_linear.1} parent=31 // pred_check
          %p182 = pneg %p63
        $region38: #{prenorm_linear.1} parent=31 // pred_check_branch
          %184 = sbr.rel (%p182) target = $region40
        $region39: #{prenorm_linear.1} parent=31 // pred_region
          %186 = dma.done [#allocation6], 512
        $region40: #{prenorm_linear.1} parent=31 // pred_fallthru
          _
        %s187 = sand.u32 %s29, 1
        %s188 = scalar_lea.sflag [#allocation3], %s187
        %s189 = sand.u32 %s29, 1
        %s190 = smul.addr %s189, 8
        %s191 = scalar_lea.vmem [#allocation2], %s190
        %p192 = pneg %p42
        %p193 = pneg %p39
        %p194 = pneg %p63
        %p195 = pneg %p60
        %p196 = pneg %p84
        %p197 = pneg %p81
        %p198 = pneg %p110
        %p199 = pneg %p107
        %s200 = sand.u32 %s97, 1
        %s201 = scalar_lea.sflag [#allocation4], %s200
        %s202 = sand.u32 %s97, 1
        %s203 = smul.addr %s202, 8
        %s204 = scalar_lea.vmem [#allocation7], %s203
        %v205 = vld [vmem:[%s176] sm:$0xff]
        %vm206 = vcmask 261120
        %v207 = vsel %vm206, %v205, 0.0
        %208 = vadd.xlane.f32.xlu0 %v207
        %v209 = vpop.xlane.xlu0 %208
        %v210 = vmul.f32 %v205, %v205
        %v211 = vsel %vm206, %v210, 0.0
        %212 = vadd.xlane.f32.xlu0 %v211
        %v213 = vpop.xlane.xlu0 %212
        %v214 = vmul.f32 %v209, 0.03125
        %v215 = vmul.f32 %v213, 0.03125
        %v216 = vmul.f32 %v214, %v214
        %v217 = vsub.f32 %v215, %v216
        %v218 = vmax.f32 %v217, 0.0
        %v219 = vsub.f32 %v205, %v214
        %v220 = vadd.f32 %v218, 1e-05
        %v221 = vrsqrt.pop %v220
        %v222 = vmul.f32 %v221, %v220
        %v223 = vmul.f32 %v222, %v221
        %v224 = vmul.f32 0.5, %v223
        %v225 = vsub.f32 1.5, %v224
        %v226 = vmul.f32 %v221, %v225
        %vm227 = vweird.f32 %v220
        %vm228 = vweird.f32 %v221
        %vm229 = vmor %vm227, %vm228
        %v230 = vsel %vm229, %v221, %v226
        %v231 = vmul.f32 %v219, %v230
        %v232 = vld [vmem:[#allocation5] sm:$0xff]
        %v233 = vld [vmem:[#allocation5 + $0x8] sm:$0xff]
        %v234 = vld [vmem:[#allocation5 + $0x10] sm:$0xff]
        %v235 = vld [vmem:[#allocation5 + $0x18] sm:$0xff]
        %v236 = vld [vmem:[%s2] sm:$0x1]
        %v238 = vperm.slane %v236, 0
        %v241 = vsel %vm206, %v231, 0
        %243 = vmatpush.msra.mxu0 0.0
        %244 = vmatpush.msra.mxu0 0.0
        %245 = vmatpush.msra.mxu0 0.0
        %246 = vmatpush.msra.mxu0 0.0
        %247 = vmatpush.msra.mxu0 0.0
        %248 = vmatpush.msra.mxu0 0.0
        %249 = vmatpush.msra.mxu0 0.0
        %250 = vmatpush.msra.mxu0 0.0
        %251 = vmatpush.msra.mxu0 0.0
        %252 = vmatpush.msra.mxu0 0.0
        %253 = vmatpush.msra.mxu0 0.0
        %254 = vmatpush.msra.mxu0 0.0
        %255 = vmatpush.msra.mxu0 %v235
        %256 = vmatpush.msra.mxu0 %v234
        %257 = vmatpush.msra.mxu0 %v233
        %258 = vmatpush.msra.mxu0 %v232
        %259 = vmatmul.f32.gmra.mxu0 %v241
        %v260 = vpop.f32.mrf.mxu0
        %v261 = vadd.f32 %v238, %v260
        %262 = vdwg.mxu0
        %263 = vst.msk [vmem:[%s204] sm:$0xff] %vm206, %v261
        %s264 = sand.u32 %s97, 1
        %s265 = scalar_lea.sflag [#allocation4], %s264
        %s266 = sand.u32 %s97, 1
        %s267 = smul.addr %s266, 8
        %s268 = scalar_lea.vmem [#allocation7], %s267
        // Predicated region
        $region41: #{prenorm_linear.1} parent=31 // pred_check
          %p269 = pneg %p107
        $region42: #{prenorm_linear.1} parent=31 // pred_check_branch
          %271 = sbr.rel (%p269) target = $region44
        $region43: #{prenorm_linear.1} parent=31 // pred_region
          %273 = vsyncadd %s265, 0
          %s274 = smul.addr %s21, 8
          %s275 = scalar_lea.hbm %s3, %s274
          %s277 = sshll.u32 %s268, 4
          %s278 = int_to_ptr.vmem [resolvable:$true] %s277
          %s279 = sshll.u32 %s275, 4
          %s280 = int_to_ptr.hbm [resolvable:$true] %s279
          %282 = dma.vmem_to_hbm [thread:$0]  %s278, 128, %s280, %s265
        $region44: #{prenorm_linear.1} parent=31 // pred_fallthru
          _
      $region32: #{prenorm_linear.1} parent=5 // pred_fallthru
        _
      %p283 = scmp.le.s32.totalorder 2, %s16
      // Predicated region
      $region45: #{prenorm_linear.1} parent=5 // pred_check
        %p284 = pneg %p283
      $region46: #{prenorm_linear.1} parent=5 // pred_check_branch
        %286 = sbr.rel (%p284) target = $region48
      $region47: #{prenorm_linear.1} parent=5 // pred_region
        %s287 = ssub.s32 %s16, 2
        // Predicated region
        $region49: #{prenorm_linear.1} parent=47 // pred_check
          %p288 = pneg %p113
        $region50: #{prenorm_linear.1} parent=47 // pred_check_branch
          %290 = sbr.rel (%p288) target = $region52
        $region51: #{prenorm_linear.1} parent=47 // pred_region
          %s291 = sand.u32 %s98, 1
          %s292 = scalar_lea.sflag [#allocation4], %s291
          %s293 = sand.u32 %s98, 1
          %s294 = smul.addr %s293, 8
          %s295 = scalar_lea.vmem [#allocation7], %s294
          %297 = dma.done %s292, 128
        $region52: #{prenorm_linear.1} parent=47 // pred_fallthru
          _
      $region48: #{prenorm_linear.1} parent=5 // pred_fallthru
        _
    $region6: #{prenorm_linear.1} parent=1 // loop_footer
      %s20 = sadd.s32 1, %s16
    $region7: #{prenorm_linear.1} parent=1 // loop_footer_branch
      %15 = sbr.rel target = $region3
    $region8: #{prenorm_linear.1} parent=1 // loop_exit
      _
    %298 = vsyncpa [#allocation3], 1
    %s299 = scalar_lea.sflag [#allocation3], 1
    %300 = vsyncpa %s299, 1
    %301 = vsyncpa [#allocation6], 1
    %302 = vsyncpa [#allocation4], 1
    %s303 = scalar_lea.sflag [#allocation4], 1
    %304 = vsyncpa %s303, 1

</llo_original>
